<compile_context>
chip_gen: v7x
topology: tpu7x:2x2x1
jax: 0.10.0
libtpu: 0.0.40
codegen_flags: <defaults>
</compile_context>

<pallas_src>
import functools
import math

import numpy as np

import jax
import jax.numpy as jnp
from jax import lax
from jax.experimental import pallas as pl
from jax.experimental.pallas import tpu as pltpu


NEG_FILL = -1e9      # fill for padded rows: never wins a max, exp() underflows cleanly to 0
LSE_FLOOR = 1e-37    # keeps log() finite for fully-padded class segments


def _focal_modulation(one_minus_p, gamma):
    """(1 - p)**gamma with a cheap repeated-multiply path for small integer gamma."""
    g = float(gamma)
    if g == 0.0:
        return jnp.ones_like(one_minus_p)
    if g.is_integer() and 1.0 <= g <= 8.0:
        mod = one_minus_p
        for _ in range(int(g) - 1):
            mod = mod * one_minus_p
        return mod
    # clamp keeps pow (exp(g*log(x))) NaN-free in degenerate / padded cases
    return jnp.power(jnp.maximum(one_minus_p, 0.0), g)


def focal_loss_kernel(x_ref, t_ref, w_ref, cls_ref, s_ref, st_ref, out_ref, *, gamma, fold):
    x = x_ref[...]                                     # (T, W) native dtype, W = K*C
    # Group max over the folded row (>= every segment's max): exp(x - m) <= 1, no overflow.
    m = jnp.max(x, axis=-1, keepdims=True)             # (T, 1), native dtype
    mf = m.astype(jnp.float32)
    xf = x.astype(jnp.float32)
    e = jnp.exp(xf - mf)                               # (T, W) f32, lane-dense EUP pass

    if fold:
        # Per-class-segment reductions on the (idle) MXU: S[l, k] = 1 iff lane l is row k.
        s = s_ref[...]                                                        # (W, K) f32 0/1
        sum_e = jnp.dot(e, s, preferred_element_type=jnp.float32)             # (T, K)
        # Broadcast each row's target across its C lanes, then pick out the target logit.
        t_dense = jnp.dot(t_ref[...], st_ref[...],
                          preferred_element_type=jnp.float32)                 # (T, W)
        sel = cls_ref[...] == t_dense                                         # (T, W) bool
        xz = jnp.where(sel, xf, 0.0)
        logit_t = jnp.dot(xz, s, preferred_element_type=jnp.float32)          # (T, K)
    else:
        # K == 1: the row's classes already span the full lane axis.
        sum_e = jnp.sum(e, axis=-1, keepdims=True)                            # (T, 1)
        col = lax.broadcasted_iota(jnp.int32, x.shape, 1)
        sel = col == t_ref[...]                                               # (T, 1) int32
        xz = jnp.where(sel, xf, 0.0)
        logit_t = jnp.sum(xz, axis=-1, keepdims=True)                         # (T, 1)

    # Per-row chain on the compact (T, K) representation (K-fold denser than a (TILE_N, 1)
    # column). Padded rows carry weight 0 -> exactly zero loss, so no masking is needed.
    lse = mf + jnp.log(jnp.maximum(sum_e, LSE_FLOOR))
    logp_t = logit_t - lse
    ce = -w_ref[...] * logp_t            # F.cross_entropy(..., weight=alpha, reduction='none')
    p = jnp.exp(-ce)
    loss = _focal_modulation(1.0 - p, gamma) * ce

    # One lane-dense output block per grid step (unmasked full-tile store); the wrapper only
    # reads a single element per tile.
    out_ref[...] = jnp.full(out_ref.shape, jnp.sum(loss), dtype=out_ref.dtype)


def _vmem_limit_bytes():
    """Generation-aware scoped-VMEM budget (v7x: 64 MiB physical vs 128 MiB on v5e/v6e)."""
    try:
        cap = int(pltpu.get_tpu_info().vmem_capacity_bytes)
    except Exception:
        cap = 64 * 1024 * 1024
    return min((3 * cap) // 4, 96 * 1024 * 1024)


def _choose_tile_rows(n_fold, width, k, itemsize, vmem_limit, row_align):
    # Bytes per folded row: double-buffered input block + ~16 B/elem of in-kernel f32
    # temporaries (cast, exp, select mask, masked logits) + the small per-row side inputs.
    per_row = width * (2 * itemsize + 16) + 4 * 8 * k
    fixed = 8 * width * (2 * k + 1) + (1 << 20)            # S, S_T, cls (double-buffered) + slack
    budget = max(per_row, (2 * vmem_limit) // 3 - fixed)
    rows = max(row_align, (budget // per_row) // row_align * row_align)
    # Keep >= ~4 grid steps when there is enough work (v7x 2-TC sharding + pipelining).
    four_way = -(-n_fold // 4)
    four_way = max(row_align, -(-four_way // row_align) * row_align)
    return int(min(rows, four_way))


def focal_loss(logits, target, alpha=None, *, gamma=2.0, size_average=True):
    """Forward pass of the PyTorch FocalLoss module.

    logits: (N, C) float (pass bf16 upstream where possible -- HBM bandwidth is the roofline
    and the kernel streams the native dtype), target: (N,) int in [0, C), alpha: None, scalar
    (binary case, like the module) or (C,) per-class weights.
    """
    assert gamma >= 0
    n, c = logits.shape
    dtype = logits.dtype
    itemsize = jnp.dtype(dtype).itemsize

    # Per-row class weight alpha[target]: a tiny (N,) gather done once in the wrapper.
    if alpha is None:
        w_row = jnp.ones((n,), jnp.float32)
    else:
        a = jnp.asarray(alpha, jnp.float32)
        if a.ndim == 0:
            a = jnp.stack([a, 1.0 - a])      # module's scalar-alpha convention
        w_row = a[target]

    # Fold K rows into the lane axis: (N, C) -> (N/K, K*C) with K*C a multiple of 128.
    if c < 128:
        k = 128 // math.gcd(c, 128)
    else:
        k = 1
    width = k * c
    if k > 1 and (width > 16384 or width * k > (1 << 20)):
        k, width = 1, c                      # fold would blow up the row width / S matrices
    fold = k > 1

    vmem_limit = _vmem_limit_bytes()
    row_align = 8 * max(1, 4 // itemsize)    # 8 f32 / 16 bf16 / 32 int8 sublane packing
    n_fold = -(-n // k)
    tile_rows = _choose_tile_rows(n_fold, width, k, itemsize, vmem_limit, row_align)
    n_fold_pad = -(-n_fold // tile_rows) * tile_rows
    num_tiles = n_fold_pad // tile_rows
    n_pad = n_fold_pad * k

    if n_pad != n:
        # Padded rows: NEG_FILL logits + zero alpha weight -> exactly zero loss in-kernel.
        logits = jnp.pad(logits, ((0, n_pad - n), (0, 0)), constant_values=NEG_FILL)
        target = jnp.pad(target, (0, n_pad - n))
        w_row = jnp.pad(w_row, (0, n_pad - n))

    x_f = logits.reshape(n_fold_pad, width)
    t_f = target.reshape(n_fold_pad, k)
    t_f = t_f.astype(jnp.float32) if fold else t_f.astype(jnp.int32)
    w_f = w_row.reshape(n_fold_pad, k).astype(jnp.float32)

    # Tiny constants: per-lane class id and the 0/1 segment matrices that drive the MXU
    # segment reductions (their block index never changes, so they stream only once).
    lane = np.arange(width)
    cls = jnp.asarray((lane % c)[None, :], jnp.float32)               # (1, W)
    seg = (lane[:, None] // c) == np.arange(k)[None, :]
    s_mat = jnp.asarray(seg, jnp.float32)                             # (W, K)
    st_mat = jnp.asarray(seg.T, jnp.float32)                          # (K, W)

    kernel = functools.partial(focal_loss_kernel, gamma=gamma, fold=fold)

    cost = pl.CostEstimate(
        flops=int(6 * k * n_pad * c + 8 * n_pad * c),
        transcendentals=int(n_pad * c + 3 * n_pad),
        bytes_accessed=int(n_pad * c * itemsize + 8 * n_pad + num_tiles * 8 * 128 * 4),
    )

    partials = pl.pallas_call(
        kernel,
        out_shape=jax.ShapeDtypeStruct((num_tiles, 8, 128), jnp.float32),
        grid=(num_tiles,),
        in_specs=[
            pl.BlockSpec((tile_rows, width), lambda i: (i, 0)),   # folded logits (native dtype)
            pl.BlockSpec((tile_rows, k), lambda i: (i, 0)),       # folded targets
            pl.BlockSpec((tile_rows, k), lambda i: (i, 0)),       # folded alpha[target]
            pl.BlockSpec((1, width), lambda i: (0, 0)),           # per-lane class id
            pl.BlockSpec((width, k), lambda i: (0, 0)),           # segment matrix S
            pl.BlockSpec((k, width), lambda i: (0, 0)),           # S^T
        ],
        out_specs=pl.BlockSpec((1, 8, 128), lambda i: (i, 0, 0)),
        compiler_params=pltpu.CompilerParams(
            dimension_semantics=("parallel",),
            vmem_limit_bytes=vmem_limit,
        ),
        cost_estimate=cost,
    )(x_f, t_f, w_f, cls, s_mat, st_mat)

    total = jnp.sum(partials[:, 0, 0])
    if size_average:
        total = total / n
    return total


def focal_loss_ref(logits, target, alpha=None, *, gamma=2.0, size_average=True):
    """Pure-JAX reference mirroring the PyTorch module (for sanity checking)."""
    logp = jax.nn.log_softmax(logits.astype(jnp.float32), axis=-1)
    logp_t = jnp.take_along_axis(logp, target[:, None], axis=-1)[:, 0]
    if alpha is None:
        w = jnp.ones_like(logp_t)
    else:
        a = jnp.asarray(alpha, jnp.float32)
        if a.ndim == 0:
            a = jnp.stack([a, 1.0 - a])
        w = a[target]
    ce = -w * logp_t
    p = jnp.exp(-ce)
    loss = (1.0 - p) ** gamma * ce
    return jnp.mean(loss) if size_average else jnp.sum(loss)


if __name__ == "__main__":
    key = jax.random.PRNGKey(0)
    k1, k2, k3, k4 = jax.random.split(key, 4)

    # Case 1: module-style per-class alpha list, gamma=2, mean reduction; N deliberately not
    # a multiple of the fold factor to exercise the zero-weight row padding.
    N, C = 13, 16
    logits = jax.random.normal(k1, (N, C), dtype=jnp.float32)
    target = jax.random.randint(k2, (N,), 0, C, dtype=jnp.int32)
    alpha = jnp.asarray([0.5 + 0.03 * i for i in range(C)], dtype=jnp.float32)
    out = jax.block_until_ready(focal_loss(logits, target, alpha, gamma=2.0, size_average=True))
    ref = focal_loss_ref(logits, target, alpha, gamma=2.0, size_average=True)
    assert jnp.allclose(out, ref, rtol=1e-4, atol=1e-5), ("case1", out, ref)

    # Case 2: C that does not divide 128 (general fold), alpha=None, non-integer gamma, sum.
    N2, C2 = 29, 10
    logits2 = jax.random.normal(k3, (N2, C2), dtype=jnp.float32)
    target2 = jax.random.randint(k4, (N2,), 0, C2, dtype=jnp.int32)
    out2 = jax.block_until_ready(focal_loss(logits2, target2, None, gamma=1.7, size_average=False))
    ref2 = focal_loss_ref(logits2, target2, None, gamma=1.7, size_average=False)
    assert jnp.allclose(out2, ref2, rtol=1e-4, atol=1e-4), ("case2", out2, ref2)

    # Case 3: C >= 128 -> no-fold (K == 1) path with a multi-tile "parallel" grid.
    N3, C3 = 24, 136
    logits3 = jax.random.normal(k1, (N3, C3), dtype=jnp.float32)
    target3 = jax.random.randint(k2, (N3,), 0, C3, dtype=jnp.int32)
    alpha3 = jnp.asarray([0.25 + 0.005 * i for i in range(C3)], dtype=jnp.float32)
    out3 = jax.block_until_ready(focal_loss(logits3, target3, alpha3, gamma=2.0, size_average=True))
    ref3 = focal_loss_ref(logits3, target3, alpha3, gamma=2.0, size_average=True)
    assert jnp.allclose(out3, ref3, rtol=1e-4, atol=1e-5), ("case3", out3, ref3)

    print("KERNEL_OK")
</pallas_src>

<mosaic_0001>
module attributes {stable_mosaic.version = 11 : i64} {
  func.func @focal_loss_kernel(%arg0: i32, %arg1: memref<8x128xf32, #tpu.memory_space<vmem>>, %arg2: memref<8x8xf32, #tpu.memory_space<vmem>>, %arg3: memref<8x8xf32, #tpu.memory_space<vmem>>, %arg4: memref<1x128xf32, #tpu.memory_space<vmem>>, %arg5: memref<128x8xf32, #tpu.memory_space<vmem>>, %arg6: memref<8x128xf32, #tpu.memory_space<vmem>>, %arg7: memref<1x8x128xf32, #tpu.memory_space<vmem>>) attributes {dimension_semantics = [#tpu.dimension_semantics<parallel>], iteration_bounds = array<i64: 1>, scalar_prefetch = 0 : i64, scratch_operands = 0 : i64, tpu.core_type = #tpu.core_type<tc>, window_params = [{transform_indices = @transform_0, window_bounds = array<i64: 8, 128>}, {transform_indices = @transform_1, window_bounds = array<i64: 8, 8>}, {transform_indices = @transform_2, window_bounds = array<i64: 8, 8>}, {pipeline_mode = #tpu.pipeline_mode<synchronous>, transform_indices = @transform_3, window_bounds = array<i64: 1, 128>}, {pipeline_mode = #tpu.pipeline_mode<synchronous>, transform_indices = @transform_4, window_bounds = array<i64: 128, 8>}, {pipeline_mode = #tpu.pipeline_mode<synchronous>, transform_indices = @transform_5, window_bounds = array<i64: 8, 128>}, {transform_indices = @transform_6, window_bounds = array<i64: 1, 8, 128>}]} {
    %c0 = arith.constant 0 : index
    %c0_0 = arith.constant 0 : index
    %0 = vector.load %arg1[%c0, %c0_0] : memref<8x128xf32, #tpu.memory_space<vmem>>, vector<8x128xf32>
    %cst = arith.constant dense<0xFF800000> : vector<8xf32>
    %1 = vector.multi_reduction <maximumf>, %0, %cst [1] : vector<8x128xf32> to vector<8xf32>
    %2 = vector.shape_cast %1 : vector<8xf32> to vector<8x1xf32>
    %3 = vector.broadcast %2 : vector<8x1xf32> to vector<8x128xf32>
    %4 = arith.subf %0, %3 : vector<8x128xf32>
    %5 = math.exp %4 : vector<8x128xf32>
    %c0_1 = arith.constant 0 : index
    %c0_2 = arith.constant 0 : index
    %6 = vector.load %arg5[%c0_1, %c0_2] : memref<128x8xf32, #tpu.memory_space<vmem>>, vector<128x8xf32>
    %cst_3 = arith.constant dense<0.000000e+00> : vector<8x8xf32>
    %7 = tpu.matmul %5, %6, %cst_3 {dimension_numbers = #tpu.dot_dimension_numbers<[1], [0], [0], [1], [0, 0, 1, 1], [], []>} : vector<8x128xf32>, vector<128x8xf32>, vector<8x8xf32> -> vector<8x8xf32>
    %c0_4 = arith.constant 0 : index
    %c0_5 = arith.constant 0 : index
    %8 = vector.load %arg2[%c0_4, %c0_5] : memref<8x8xf32, #tpu.memory_space<vmem>>, vector<8x8xf32>
    %c0_6 = arith.constant 0 : index
    %c0_7 = arith.constant 0 : index
    %9 = vector.load %arg6[%c0_6, %c0_7] : memref<8x128xf32, #tpu.memory_space<vmem>>, vector<8x128xf32>
    %cst_8 = arith.constant dense<0.000000e+00> : vector<8x128xf32>
    %10 = tpu.matmul %8, %9, %cst_8 {dimension_numbers = #tpu.dot_dimension_numbers<[1], [0], [0], [1], [0, 0, 1, 1], [], []>} : vector<8x8xf32>, vector<8x128xf32>, vector<8x128xf32> -> vector<8x128xf32>
    %c0_9 = arith.constant 0 : index
    %c0_10 = arith.constant 0 : index
    %11 = vector.load %arg4[%c0_9, %c0_10] : memref<1x128xf32, #tpu.memory_space<vmem>>, vector<1x128xf32>
    %12 = vector.broadcast %11 : vector<1x128xf32> to vector<8x128xf32>
    %13 = arith.cmpf oeq, %12, %10 : vector<8x128xf32>
    %cst_11 = arith.constant 0.000000e+00 : f32
    %14 = vector.broadcast %cst_11 : f32 to vector<8x128xf32>
    %15 = arith.select %13, %0, %14 : vector<8x128xi1>, vector<8x128xf32>
    %cst_12 = arith.constant dense<0.000000e+00> : vector<8x8xf32>
    %16 = tpu.matmul %15, %6, %cst_12 {dimension_numbers = #tpu.dot_dimension_numbers<[1], [0], [0], [1], [0, 0, 1, 1], [], []>} : vector<8x128xf32>, vector<128x8xf32>, vector<8x8xf32> -> vector<8x8xf32>
    %cst_13 = arith.constant 9.99999991E-38 : f32
    %17 = vector.broadcast %cst_13 : f32 to vector<8x8xf32>
    %18 = arith.maximumf %7, %17 : vector<8x8xf32>
    %19 = math.log %18 : vector<8x8xf32>
    %20 = vector.broadcast %2 : vector<8x1xf32> to vector<8x8xf32>
    %21 = arith.addf %20, %19 : vector<8x8xf32>
    %22 = arith.subf %16, %21 : vector<8x8xf32>
    %c0_14 = arith.constant 0 : index
    %c0_15 = arith.constant 0 : index
    %23 = vector.load %arg3[%c0_14, %c0_15] : memref<8x8xf32, #tpu.memory_space<vmem>>, vector<8x8xf32>
    %cst_16 = arith.constant 0.000000e+00 : f32
    %24 = vector.broadcast %cst_16 : f32 to vector<8x8xf32>
    %25 = arith.subf %24, %23 : vector<8x8xf32>
    %26 = arith.mulf %25, %22 : vector<8x8xf32>
    %cst_17 = arith.constant 0.000000e+00 : f32
    %27 = vector.broadcast %cst_17 : f32 to vector<8x8xf32>
    %28 = arith.subf %27, %26 : vector<8x8xf32>
    %29 = math.exp %28 : vector<8x8xf32>
    %cst_18 = arith.constant 1.000000e+00 : f32
    %30 = vector.broadcast %cst_18 : f32 to vector<8x8xf32>
    %31 = arith.subf %30, %29 : vector<8x8xf32>
    %32 = arith.mulf %31, %31 : vector<8x8xf32>
    %33 = arith.mulf %32, %26 : vector<8x8xf32>
    %34 = vector.shape_cast %33 : vector<8x8xf32> to vector<1x8x8xf32>
    %cst_19 = arith.constant dense<0.000000e+00> : vector<1xf32>
    %35 = vector.multi_reduction <add>, %34, %cst_19 [1, 2] : vector<1x8x8xf32> to vector<1xf32>
    %36 = vector.shape_cast %35 : vector<1xf32> to vector<1x1x1xf32>
    %37 = vector.extract %36[0, 0, 0] : f32 from vector<1x1x1xf32>
    %38 = vector.broadcast %37 : f32 to vector<1x8x128xf32>
    %c0_20 = arith.constant 0 : index
    %c0_21 = arith.constant 0 : index
    %c0_22 = arith.constant 0 : index
    %39 = vector.load %arg7[%c0_20, %c0_21, %c0_22] : memref<1x8x128xf32, #tpu.memory_space<vmem>>, vector<1x8x128xf32>
    tpu.vector_store %arg7[%c0_20, %c0_21, %c0_22], %38 {strides = array<i32>} : memref<1x8x128xf32, #tpu.memory_space<vmem>>, vector<1x8x128xf32>,
    return
  }
  func.func @transform_0(%arg0: i32) -> (i32, i32) {
    %c0_i32 = arith.constant 0 : i32
    %c0_i32_0 = arith.constant 0 : i32
    return %arg0, %c0_i32 : i32, i32
  }
  func.func @transform_1(%arg0: i32) -> (i32, i32) {
    %c0_i32 = arith.constant 0 : i32
    %c0_i32_0 = arith.constant 0 : i32
    return %arg0, %c0_i32 : i32, i32
  }
  func.func @transform_2(%arg0: i32) -> (i32, i32) {
    %c0_i32 = arith.constant 0 : i32
    %c0_i32_0 = arith.constant 0 : i32
    return %arg0, %c0_i32 : i32, i32
  }
  func.func @transform_3(%arg0: i32) -> (i32, i32) {
    %c0_i32 = arith.constant 0 : i32
    %c0_i32_0 = arith.constant 0 : i32
    %c0_i32_1 = arith.constant 0 : i32
    return %c0_i32, %c0_i32_0 : i32, i32
  }
  func.func @transform_4(%arg0: i32) -> (i32, i32) {
    %c0_i32 = arith.constant 0 : i32
    %c0_i32_0 = arith.constant 0 : i32
    %c0_i32_1 = arith.constant 0 : i32
    return %c0_i32, %c0_i32_0 : i32, i32
  }
  func.func @transform_5(%arg0: i32) -> (i32, i32) {
    %c0_i32 = arith.constant 0 : i32
    %c0_i32_0 = arith.constant 0 : i32
    %c0_i32_1 = arith.constant 0 : i32
    return %c0_i32, %c0_i32_0 : i32, i32
  }
  func.func @transform_6(%arg0: i32) -> (i32, i32, i32) {
    %c0_i32 = arith.constant 0 : i32
    %c0_i32_0 = arith.constant 0 : i32
    %c0_i32_1 = arith.constant 0 : i32
    return %arg0, %c0_i32, %c0_i32_0 : i32, i32, i32
  }
}

</mosaic_0001>

<llo_original>
// kernel: tpu_custom_call.1
$region0: #{tpu_custom_call.1}
  #allocation0 [shape = 'u32[]', space=smem, size = 0x4, offset = 0x4, fixed_abs, tag = 'smem constant byte address 0x4 - core index']
  #allocation1 [shape = 'u32[144,128]{1,0:T(1,128)}', space=vmem, size = 0x12000, scoped, tag = 'internal scratch']
  %s0 = inlined_call_operand.vmem [shape: f32[8,128], index: 0, kind: input, shape index: {}]
  %s1 = inlined_call_operand.vmem [shape: f32[8,8], index: 1, kind: input, shape index: {}]
  %s2 = inlined_call_operand.vmem [shape: f32[8,8], index: 2, kind: input, shape index: {}]
  %s3 = inlined_call_operand.vmem [shape: f32[1,128], index: 3, kind: input, shape index: {}]
  %s4 = inlined_call_operand.vmem [shape: f32[128,8], index: 4, kind: input, shape index: {}]
  %s5 = inlined_call_operand.vmem [shape: f32[8,128], index: 5, kind: input, shape index: {}]
  %s6 = inlined_call_operand.hbm [shape: f32[1,8,128], index: 6, kind: output, shape index: {}]
  %s7 = sld [smem:[#allocation0]]
  $region34: #{tpu_custom_call.1} parent=0
    _
  %s9 = ssub.s32 1, %s7
  %s10 = scalar_select 0, %s9, %s7
  $region1: #{tpu_custom_call.1} parent=0
    #allocation2 [shape = 'u8[4096]{0}', space=vmem, size = 0x1000, scoped, tag = 'output window, operand 0, single buffered']
    #allocation3 [shape = 's32[1]{0}', space=sflag, size = 0x4, scoped, tag = 'scoped memory for tpu_custom_call.1']
    %11 = vsyncpa [#allocation3], 0
    // Predicated region
    $region2: #{tpu_custom_call.1} parent=1 // pred_check
      _
    $region3: #{tpu_custom_call.1} parent=1 // pred_check_branch
      %13 = sbr.rel (0) target = $region5
    $region4: #{tpu_custom_call.1} parent=1 // pred_region
      _
    $region5: #{tpu_custom_call.1} parent=1 // pred_fallthru
      _
    // Predicated region
    $region6: #{tpu_custom_call.1} parent=1 // pred_check
      _
    $region7: #{tpu_custom_call.1} parent=1 // pred_check_branch
      %15 = sbr.rel (0) target = $region9
    $region8: #{tpu_custom_call.1} parent=1 // pred_region
      _
    $region9: #{tpu_custom_call.1} parent=1 // pred_fallthru
      _
    // Predicated region
    $region10: #{tpu_custom_call.1} parent=1 // pred_check
      _
    $region11: #{tpu_custom_call.1} parent=1 // pred_check_branch
      %17 = sbr.rel (0) target = $region13
    $region12: #{tpu_custom_call.1} parent=1 // pred_region
      _
    $region13: #{tpu_custom_call.1} parent=1 // pred_fallthru
      _
    // Predicated region
    $region14: #{tpu_custom_call.1} parent=1 // pred_check
      _
    $region15: #{tpu_custom_call.1} parent=1 // pred_check_branch
      %19 = sbr.rel (0) target = $region17
    $region16: #{tpu_custom_call.1} parent=1 // pred_region
      _
    $region17: #{tpu_custom_call.1} parent=1 // pred_fallthru
      _
    // Predicated region
    $region18: #{tpu_custom_call.1} parent=1 // pred_check
      _
    $region19: #{tpu_custom_call.1} parent=1 // pred_check_branch
      %21 = sbr.rel (0) target = $region21
    $region20: #{tpu_custom_call.1} parent=1 // pred_region
      _
    $region21: #{tpu_custom_call.1} parent=1 // pred_fallthru
      _
    // Predicated region
    $region22: #{tpu_custom_call.1} parent=1 // pred_check
      _
    $region23: #{tpu_custom_call.1} parent=1 // pred_check_branch
      %23 = sbr.rel (0) target = $region25
    $region24: #{tpu_custom_call.1} parent=1 // pred_region
      _
    $region25: #{tpu_custom_call.1} parent=1 // pred_fallthru
      _
    %v24 = vld [vmem:[%s0] sm:$0xff]
    %25 = vmax.xlane.f32.xlu0 %v24
    %v26 = vpop.xlane.xlu0 %25
    %v27 = vsub.f32 %v24, %v26
    %v28 = vmul.f32 %v27, 1.442695
    %v29 = vpow.pop %v28
    %v30 = vld [vmem:[%s4] sm:$0xff]
    %v31 = vld [vmem:[%s4 + $0x8] sm:$0xff]
    %v32 = vld [vmem:[%s4 + $0x10] sm:$0xff]
    %v33 = vld [vmem:[%s4 + $0x18] sm:$0xff]
    %v34 = vld [vmem:[%s4 + $0x20] sm:$0xff]
    %v35 = vld [vmem:[%s4 + $0x28] sm:$0xff]
    %v36 = vld [vmem:[%s4 + $0x30] sm:$0xff]
    %v37 = vld [vmem:[%s4 + $0x38] sm:$0xff]
    %v38 = vld [vmem:[%s4 + $0x40] sm:$0xff]
    %v39 = vld [vmem:[%s4 + $0x48] sm:$0xff]
    %v40 = vld [vmem:[%s4 + $0x50] sm:$0xff]
    %v41 = vld [vmem:[%s4 + $0x58] sm:$0xff]
    %v42 = vld [vmem:[%s4 + $0x60] sm:$0xff]
    %v43 = vld [vmem:[%s4 + $0x68] sm:$0xff]
    %v44 = vld [vmem:[%s4 + $0x70] sm:$0xff]
    %v45 = vld [vmem:[%s4 + $0x78] sm:$0xff]
    %46 = vmatprep.subr.mxu0 0.0
    %47 = vmatpush1.msra.mxu0 %v30
    %48 = vmatprep.subr.mxu0 0.0
    %49 = vmatpush1.msra.mxu0 %v31
    %50 = vmatprep.subr.mxu0 0.0
    %51 = vmatpush1.msra.mxu0 %v32
    %52 = vmatprep.subr.mxu0 0.0
    %53 = vmatpush1.msra.mxu0 %v33
    %54 = vmatprep.subr.mxu0 0.0
    %55 = vmatpush1.msra.mxu0 %v34
    %56 = vmatprep.subr.mxu0 0.0
    %57 = vmatpush1.msra.mxu0 %v35
    %58 = vmatprep.subr.mxu0 0.0
    %59 = vmatpush1.msra.mxu0 %v36
    %60 = vmatprep.subr.mxu0 0.0
    %61 = vmatpush1.msra.mxu0 %v37
    %62 = vmatprep.subr.mxu0 0.0
    %63 = vmatpush1.msra.mxu0 %v38
    %64 = vmatprep.subr.mxu0 0.0
    %65 = vmatpush1.msra.mxu0 %v39
    %66 = vmatprep.subr.mxu0 0.0
    %67 = vmatpush1.msra.mxu0 %v40
    %68 = vmatprep.subr.mxu0 0.0
    %69 = vmatpush1.msra.mxu0 %v41
    %70 = vmatprep.subr.mxu0 0.0
    %71 = vmatpush1.msra.mxu0 %v42
    %72 = vmatprep.subr.mxu0 0.0
    %73 = vmatpush1.msra.mxu0 %v43
    %74 = vmatprep.subr.mxu0 0.0
    %75 = vmatpush1.msra.mxu0 %v44
    %76 = vmatprep.subr.mxu0 0.0
    %77 = vmatpush1.msra.mxu0 %v45
    %78 = vmatprep.subr.mxu0 0.0
    %79 = vmatpush1.msra.mxu0 0.0
    %80 = vmatprep.subr.mxu0 0.0
    %81 = vmatpush1.msra.mxu0 0.0
    %82 = vmatprep.subr.mxu0 0.0
    %83 = vmatpush1.msra.mxu0 0.0
    %84 = vmatprep.subr.mxu0 0.0
    %85 = vmatpush1.msra.mxu0 0.0
    %86 = vmatprep.subr.mxu0 0.0
    %87 = vmatpush1.msra.mxu0 0.0
    %88 = vmatprep.subr.mxu0 0.0
    %89 = vmatpush1.msra.mxu0 0.0
    %90 = vmatprep.subr.mxu0 0.0
    %91 = vmatpush1.msra.mxu0 0.0
    %92 = vmatprep.subr.mxu0 0.0
    %93 = vmatpush1.msra.mxu0 0.0
    %94 = vmatprep.subr.mxu0 0.0
    %95 = vmatpush1.msra.mxu0 0.0
    %96 = vmatprep.subr.mxu0 0.0
    %97 = vmatpush1.msra.mxu0 0.0
    %98 = vmatprep.subr.mxu0 0.0
    %99 = vmatpush1.msra.mxu0 0.0
    %100 = vmatprep.subr.mxu0 0.0
    %101 = vmatpush1.msra.mxu0 0.0
    %102 = vmatprep.subr.mxu0 0.0
    %103 = vmatpush1.msra.mxu0 0.0
    %104 = vmatprep.subr.mxu0 0.0
    %105 = vmatpush1.msra.mxu0 0.0
    %106 = vmatprep.subr.mxu0 0.0
    %107 = vmatpush1.msra.mxu0 0.0
    %108 = vmatprep.subr.mxu0 0.0
    %109 = vmatpush1.msra.mxu0 0.0
    %110 = vmatprep.mubr.f32.mxu0 0.0
    %111 = vmatmul.mubr.f32.gmra.mrb[0].mxu0 %v29
    %v112 = vpop.f32.mrb[0].mxu0
    %v113 = vadd.f32 0.0, %v112
    %v114 = vpop.f32.mrb[0].mxu0
    %115 = vdwg.mxu0
    %v116 = vld [vmem:[%s1] sm:$0xff]
    %v117 = vld [vmem:[%s5] sm:$0xff]
    %vm118 = vcmask 64512
    %v120 = vsel %vm118, %v116, 0
    %122 = vmatprep.subr.mxu0 0.0
    %123 = vmatpush1.msra.mxu0 %v117
    %124 = vmatprep.subr.mxu0 0.0
    %125 = vmatpush1.msra.mxu0 0.0
    %126 = vmatprep.subr.mxu0 0.0
    %127 = vmatpush1.msra.mxu0 0.0
    %128 = vmatprep.subr.mxu0 0.0
    %129 = vmatpush1.msra.mxu0 0.0
    %130 = vmatprep.subr.mxu0 0.0
    %131 = vmatpush1.msra.mxu0 0.0
    %132 = vmatprep.subr.mxu0 0.0
    %133 = vmatpush1.msra.mxu0 0.0
    %134 = vmatprep.subr.mxu0 0.0
    %135 = vmatpush1.msra.mxu0 0.0
    %136 = vmatprep.subr.mxu0 0.0
    %137 = vmatpush1.msra.mxu0 0.0
    %138 = vmatprep.subr.mxu0 0.0
    %139 = vmatpush1.msra.mxu0 0.0
    %140 = vmatprep.subr.mxu0 0.0
    %141 = vmatpush1.msra.mxu0 0.0
    %142 = vmatprep.subr.mxu0 0.0
    %143 = vmatpush1.msra.mxu0 0.0
    %144 = vmatprep.subr.mxu0 0.0
    %145 = vmatpush1.msra.mxu0 0.0
    %146 = vmatprep.subr.mxu0 0.0
    %147 = vmatpush1.msra.mxu0 0.0
    %148 = vmatprep.subr.mxu0 0.0
    %149 = vmatpush1.msra.mxu0 0.0
    %150 = vmatprep.subr.mxu0 0.0
    %151 = vmatpush1.msra.mxu0 0.0
    %152 = vmatprep.subr.mxu0 0.0
    %153 = vmatpush1.msra.mxu0 0.0
    %154 = vmatprep.subr.mxu0 0.0
    %155 = vmatpush1.msra.mxu0 0.0
    %156 = vmatprep.subr.mxu0 0.0
    %157 = vmatpush1.msra.mxu0 0.0
    %158 = vmatprep.subr.mxu0 0.0
    %159 = vmatpush1.msra.mxu0 0.0
    %160 = vmatprep.subr.mxu0 0.0
    %161 = vmatpush1.msra.mxu0 0.0
    %162 = vmatprep.subr.mxu0 0.0
    %163 = vmatpush1.msra.mxu0 0.0
    %164 = vmatprep.subr.mxu0 0.0
    %165 = vmatpush1.msra.mxu0 0.0
    %166 = vmatprep.subr.mxu0 0.0
    %167 = vmatpush1.msra.mxu0 0.0
    %168 = vmatprep.subr.mxu0 0.0
    %169 = vmatpush1.msra.mxu0 0.0
    %170 = vmatprep.subr.mxu0 0.0
    %171 = vmatpush1.msra.mxu0 0.0
    %172 = vmatprep.subr.mxu0 0.0
    %173 = vmatpush1.msra.mxu0 0.0
    %174 = vmatprep.subr.mxu0 0.0
    %175 = vmatpush1.msra.mxu0 0.0
    %176 = vmatprep.subr.mxu0 0.0
    %177 = vmatpush1.msra.mxu0 0.0
    %178 = vmatprep.subr.mxu0 0.0
    %179 = vmatpush1.msra.mxu0 0.0
    %180 = vmatprep.subr.mxu0 0.0
    %181 = vmatpush1.msra.mxu0 0.0
    %182 = vmatprep.subr.mxu0 0.0
    %183 = vmatpush1.msra.mxu0 0.0
    %184 = vmatprep.subr.mxu0 0.0
    %185 = vmatpush1.msra.mxu0 0.0
    %186 = vmatprep.mubr.f32.mxu0 0.0
    %187 = vmatmul.mubr.f32.gmra.mrb[0].mxu0 %v120
    %v188 = vpop.f32.mrb[0].mxu0
    %v189 = vadd.f32 0.0, %v188
    %v190 = vpop.f32.mrb[0].mxu0
    %191 = vdwg.mxu0
    %v192 = vld [vmem:[%s3] sm:$0x1]
    %v194 = vlaneseq
    %v195 = vshrl.u32 %v194, 7
    %v196 = vsub.s32 0, %v195
    %v197 = vrot.slane %v192, %v196
    %vm199 = vcmp.eq.f32.partialorder %v197, %v189
    %v200 = vsel %vm199, %v24, 0.0
    %201 = vmatprep.subr.mxu0 0.0
    %202 = vmatpush1.msra.mxu0 %v30
    %203 = vmatprep.subr.mxu0 0.0
    %204 = vmatpush1.msra.mxu0 %v31
    %205 = vmatprep.subr.mxu0 0.0
    %206 = vmatpush1.msra.mxu0 %v32
    %207 = vmatprep.subr.mxu0 0.0
    %208 = vmatpush1.msra.mxu0 %v33
    %209 = vmatprep.subr.mxu0 0.0
    %210 = vmatpush1.msra.mxu0 %v34
    %211 = vmatprep.subr.mxu0 0.0
    %212 = vmatpush1.msra.mxu0 %v35
    %213 = vmatprep.subr.mxu0 0.0
    %214 = vmatpush1.msra.mxu0 %v36
    %215 = vmatprep.subr.mxu0 0.0
    %216 = vmatpush1.msra.mxu0 %v37
    %217 = vmatprep.subr.mxu0 0.0
    %218 = vmatpush1.msra.mxu0 %v38
    %219 = vmatprep.subr.mxu0 0.0
    %220 = vmatpush1.msra.mxu0 %v39
    %221 = vmatprep.subr.mxu0 0.0
    %222 = vmatpush1.msra.mxu0 %v40
    %223 = vmatprep.subr.mxu0 0.0
    %224 = vmatpush1.msra.mxu0 %v41
    %225 = vmatprep.subr.mxu0 0.0
    %226 = vmatpush1.msra.mxu0 %v42
    %227 = vmatprep.subr.mxu0 0.0
    %228 = vmatpush1.msra.mxu0 %v43
    %229 = vmatprep.subr.mxu0 0.0
    %230 = vmatpush1.msra.mxu0 %v44
    %231 = vmatprep.subr.mxu0 0.0
    %232 = vmatpush1.msra.mxu0 %v45
    %233 = vmatprep.subr.mxu0 0.0
    %234 = vmatpush1.msra.mxu0 0.0
    %235 = vmatprep.subr.mxu0 0.0
    %236 = vmatpush1.msra.mxu0 0.0
    %237 = vmatprep.subr.mxu0 0.0
    %238 = vmatpush1.msra.mxu0 0.0
    %239 = vmatprep.subr.mxu0 0.0
    %240 = vmatpush1.msra.mxu0 0.0
    %241 = vmatprep.subr.mxu0 0.0
    %242 = vmatpush1.msra.mxu0 0.0
    %243 = vmatprep.subr.mxu0 0.0
    %244 = vmatpush1.msra.mxu0 0.0
    %245 = vmatprep.subr.mxu0 0.0
    %246 = vmatpush1.msra.mxu0 0.0
    %247 = vmatprep.subr.mxu0 0.0
    %248 = vmatpush1.msra.mxu0 0.0
    %249 = vmatprep.subr.mxu0 0.0
    %250 = vmatpush1.msra.mxu0 0.0
    %251 = vmatprep.subr.mxu0 0.0
    %252 = vmatpush1.msra.mxu0 0.0
    %253 = vmatprep.subr.mxu0 0.0
    %254 = vmatpush1.msra.mxu0 0.0
    %255 = vmatprep.subr.mxu0 0.0
    %256 = vmatpush1.msra.mxu0 0.0
    %257 = vmatprep.subr.mxu0 0.0
    %258 = vmatpush1.msra.mxu0 0.0
    %259 = vmatprep.subr.mxu0 0.0
    %260 = vmatpush1.msra.mxu0 0.0
    %261 = vmatprep.subr.mxu0 0.0
    %262 = vmatpush1.msra.mxu0 0.0
    %263 = vmatprep.subr.mxu0 0.0
    %264 = vmatpush1.msra.mxu0 0.0
    %265 = vmatprep.mubr.f32.mxu0 0.0
    %266 = vmatmul.mubr.f32.gmra.mrb[0].mxu0 %v200
    %v267 = vpop.f32.mrb[0].mxu0
    %v268 = vadd.f32 0.0, %v267
    %v269 = vpop.f32.mrb[0].mxu0
    %270 = vdwg.mxu0
    %v271 = vmax.f32 %v113, 1e-37
    %v272 = vlog2.pop %v271
    %v273 = vmul.f32 %v272, 0.6931472
    %v274 = vadd.f32 %v26, %v273
    %v275 = vsub.f32 %v268, %v274
    %v276 = vld [vmem:[%s2] sm:$0xff]
    %v277 = vsub.f32 0.0, %v276
    %v278 = vmul.f32 %v277, %v275
    %v279 = vsub.f32 0.0, %v278
    %v280 = vmul.f32 %v279, 1.442695
    %v281 = vpow.pop %v280
    %v282 = vsub.f32 1.0, %v281
    %v283 = vmul.f32 %v282, %v282
    %v284 = vmul.f32 %v283, %v278
    %v285 = vsel %vm118, %v284, 0.0
    %286 = vadd.xlane.f32.xlu0 %v285
    %v287 = vpop.xlane.xlu0 %286
    %v288 = vrot.slane %v287, 4
    %v289 = vadd.f32 %v287, %v288
    %v290 = vrot.slane %v289, 2
    %v291 = vadd.f32 %v289, %v290
    %v292 = vrot.slane %v291, 1
    %v293 = vadd.f32 %v291, %v292
    %s294 = vtos %v293
    %v295 = vstv %s294
    %296 = vst [vmem:[#allocation2] sm:$0xff] %v295
    // Predicated region
    $region26: #{tpu_custom_call.1} parent=1 // pred_check
      _
    $region27: #{tpu_custom_call.1} parent=1 // pred_check_branch
      %298 = sbr.rel (0) target = $region29
    $region28: #{tpu_custom_call.1} parent=1 // pred_region
      %s300 = ssub.s32 128, 128
      %301 = vsyncadd [#allocation3], %s300
      %s303 = sshll.u32 [#allocation2], 4
      %s304 = int_to_ptr.vmem [resolvable:$true] %s303
      %306 = dma.vmem_to_hbm [thread:$0]  %s304, 128, %s6, [#allocation3]
    $region29: #{tpu_custom_call.1} parent=1 // pred_fallthru
      _
    // Predicated region
    $region30: #{tpu_custom_call.1} parent=1 // pred_check
      _
    $region31: #{tpu_custom_call.1} parent=1 // pred_check_branch
      %308 = sbr.rel (0) target = $region33
    $region32: #{tpu_custom_call.1} parent=1 // pred_region
      %309 = dma.done [#allocation3], 128
    $region33: #{tpu_custom_call.1} parent=1 // pred_fallthru
      _
    %310 = vsyncpa [#allocation3], 1

</llo_original>
